<compile_context>
chip_gen: v7x
topology: tpu7x:2x2x1
jax: 0.10.0
libtpu: 0.0.40
codegen_flags: <defaults>
</compile_context>

<pallas_src>
import functools
from math import sqrt

import jax
import jax.numpy as jnp
from jax import lax
from jax.experimental import pallas as pl
from jax.experimental.pallas import tpu as pltpu


# ---------------------------------------------------------------------------
# Stage 1: fused QKV projection  q = relu(xWq+bq), k = xWk+bk, v = relu(xWv+bv)
# ---------------------------------------------------------------------------
def _qkv_proj_kernel(x_ref, wqkv_ref, bqkv_ref, q_ref, k_ref, v_ref):
    D = x_ref.shape[2]
    w = wqkv_ref[...]
    xb = x_ref[0].astype(w.dtype)                                            # (TR, D)
    qkv = jnp.dot(xb, w, preferred_element_type=jnp.float32) + bqkv_ref[0]   # (TR, 3D)
    # relu only on the q / v thirds, via sliced stores (no full-width iota+select).
    q_ref[0] = jnp.maximum(qkv[:, :D], 0.0).astype(q_ref.dtype)
    k_ref[0] = qkv[:, D:2 * D].astype(k_ref.dtype)
    v_ref[0] = jnp.maximum(qkv[:, 2 * D:], 0.0).astype(v_ref.dtype)


# ---------------------------------------------------------------------------
# Stage 2: top-k attention + output projection + residual
# ---------------------------------------------------------------------------
def _attn_kernel(q_ref, kt_ref, v_ref, x_ref, wo_ref, bo_ref, out_ref, *rest,
                 n_heads, top_k, with_attn):
    if with_attn:
        attn_ref = rest[0]
        sc_scr, thr_scr, mx_scr = rest[1:]
    else:
        attn_ref = None
        sc_scr, thr_scr, mx_scr = rest

    tq = q_ref.shape[1]
    D = q_ref.shape[2]
    S = kt_ref.shape[2]
    E = D // n_heads
    scale = 1.0 / sqrt(E)

    cr = 8 if tq % 8 == 0 else tq          # row-chunk size for the threshold pass
    num_chunks = tq // cr

    acc = jnp.zeros((tq, D), jnp.float32)  # sum_h (A_h @ V_h) @ Wo[hE:(h+1)E, :]

    for h in range(n_heads):               # static: n_heads is small
        qh = q_ref[0, :, h * E:(h + 1) * E]              # (TQ, E)  relu(q), head h
        kth = kt_ref[0, h * E:(h + 1) * E, :]            # (E, S)   pre-transposed K
        vh = v_ref[0, :, h * E:(h + 1) * E]              # (S, E)   relu(v)

        # Scores for this head; single (TQ, S) tile lives in a VMEM scratch.
        sc_scr[...] = jnp.dot(qh, kth, preferred_element_type=jnp.float32)

        # Exact, tie-aware k-th-largest threshold per row (matches torch.topk
        # semantics: keep scores >= k-th value, ties included).  Processed in
        # cr-row chunks so per-chunk temporaries stay in vregs; the row max is
        # captured from the first iteration and reused as the softmax shift.
        def _chunk(c, carry):
            r0 = pl.multiple_of(c * cr, cr)
            sc_c = sc_scr[pl.ds(r0, cr), :]                              # (cr, S)
            remaining = sc_c
            kept = jnp.zeros((cr, 1), jnp.float32)
            thr = jnp.full((cr, 1), -jnp.inf, jnp.float32)
            row_max = None
            for t in range(top_k):                                       # static unroll
                cur = jnp.max(remaining, axis=-1, keepdims=True)
                if t == 0:
                    row_max = cur
                need = kept < top_k
                thr = jnp.where(need, cur, thr)
                ties = jnp.sum((remaining == cur).astype(jnp.float32),
                               axis=-1, keepdims=True)
                kept = kept + jnp.where(need, ties, 0.0)
                remaining = jnp.where(remaining == cur, -jnp.inf, remaining)
            thr_scr[pl.ds(r0, cr), :] = thr
            mx_scr[pl.ds(r0, cr), :] = row_max
            return carry

        lax.fori_loop(0, num_chunks, _chunk, 0)

        sc = sc_scr[...]
        logits = jnp.where(sc >= thr_scr[...], sc * scale, -jnp.inf)
        p = jnp.exp(logits - mx_scr[...] * scale)
        denom = jnp.sum(p, axis=-1, keepdims=True)
        # exact reciprocal keeps bit-level agreement with the f32 reference;
        # approx=True is a free EUP win if looser tolerance is acceptable.
        a = p * pl.reciprocal(denom, approx=False)                        # (TQ, S)

        if with_attn:
            attn_ref[0, h] = a

        av = jnp.dot(a.astype(vh.dtype), vh, preferred_element_type=jnp.float32)  # (TQ, E)
        wo_h = wo_ref[h * E:(h + 1) * E, :]                                        # (E, D)
        acc = acc + jnp.dot(av.astype(wo_h.dtype), wo_h,
                            preferred_element_type=jnp.float32)

    # Residual is read only here, keeping it out of the head loop's live set.
    out_ref[0] = (x_ref[0] + acc + bo_ref[0]).astype(out_ref.dtype)


# ---------------------------------------------------------------------------
# Wrapper
# ---------------------------------------------------------------------------
def _vmem_cap_bytes():
    """~80% of the actual chip VMEM (128 MiB on v5e/v6e, 64 MiB on v7x)."""
    try:
        return int(0.8 * pltpu.get_tpu_info().vmem_capacity_bytes)
    except Exception:
        return 48 * 2**20      # conservative fallback that still fits v7x's 64 MiB


def _pick_row_tile(L):
    for cand in (512, 256, 128, 64, 32, 16, 8):
        if L % cand == 0:
            return cand
    return L


def _pick_q_tile(L, budget_rows):
    for cand in (256, 128, 64, 32, 16, 8):
        if cand <= budget_rows and L % cand == 0:
            return cand
    # TODO(synk): L with no multiple-of-8 divisor falls back to a single query tile;
    # a pad+mask variant would be needed to tile very large such L.
    return L


def encoder_forward(x, params, *, n_heads, top_k, return_attn=True, use_bf16=False):
    """Encoder forward: returns (x + GAttn(x, x, x), A) (or just the output if return_attn=False)."""
    B, L, D = x.shape
    S = L
    assert D % n_heads == 0, "d_model must be divisible by n_heads"
    assert 1 <= top_k <= S, "top_k must be in [1, seq_len]"
    wq, bq, wk, bk, wv, bv, wo, bo = params

    # bf16 weights/activations engage the MXU fast path on v6e/v7x (accumulation stays
    # f32).  Default f32 keeps 1e-5 parity with the reference.
    w_dtype = jnp.bfloat16 if use_bf16 else jnp.float32
    act_dtype = jnp.bfloat16 if use_bf16 else jnp.float32
    asz = jnp.dtype(act_dtype).itemsize
    wsz = jnp.dtype(w_dtype).itemsize

    wqkv = jnp.concatenate([wq, wk, wv], axis=1).astype(w_dtype)       # (D, 3D)
    bqkv = jnp.concatenate([bq, bk, bv], axis=1).astype(jnp.float32)   # (1, 3D)
    wo_c = wo.astype(w_dtype)
    bo_c = bo.astype(jnp.float32)

    cap = _vmem_cap_bytes()

    # ---- stage 1: fused QKV projection, tiled over (batch, row tile) --------
    tr = _pick_row_tile(L)
    num_r = L // tr

    proj_est = int(2 * tr * D * 4                          # x block (double-buffered)
                   + 2 * (D * 3 * D * wsz + 3 * D * 4)     # fused weights + bias
                   + 3 * 2 * tr * D * asz                  # q/k/v output blocks
                   + 2 * tr * 3 * D * 4)                   # in-kernel temporaries
    proj_vmem = int(min(cap, max(32 * 2**20, 2 * proj_est)))

    proj_cost = pl.CostEstimate(
        flops=2 * B * L * D * 3 * D,
        transcendentals=0,
        bytes_accessed=int(B * L * D * 4 + D * 3 * D * wsz + 3 * B * L * D * asz))

    q_act, k_act, v_act = pl.pallas_call(
        _qkv_proj_kernel,
        out_shape=(jax.ShapeDtypeStruct((B, L, D), act_dtype),
                   jax.ShapeDtypeStruct((B, L, D), act_dtype),
                   jax.ShapeDtypeStruct((B, L, D), act_dtype)),
        grid=(B, num_r),
        in_specs=[pl.BlockSpec((1, tr, D), lambda b, r: (b, r, 0)),
                  pl.BlockSpec((D, 3 * D), lambda b, r: (0, 0)),
                  pl.BlockSpec((1, 3 * D), lambda b, r: (0, 0))],
        out_specs=(pl.BlockSpec((1, tr, D), lambda b, r: (b, r, 0)),
                   pl.BlockSpec((1, tr, D), lambda b, r: (b, r, 0)),
                   pl.BlockSpec((1, tr, D), lambda b, r: (b, r, 0))),
        compiler_params=pltpu.CompilerParams(
            dimension_semantics=("parallel", "parallel"),
            vmem_limit_bytes=proj_vmem),
        cost_estimate=proj_cost,
    )(x, wqkv, bqkv)

    # Pre-transpose K once (cheap XLA relayout between the two calls) so each head's
    # score matmul in the attention kernel is a plain (TQ,E)@(E,S) dot -- no per-head /
    # per-query-tile XLU transpose competing with the top-k reductions.
    kt_act = jnp.swapaxes(k_act, 1, 2)                     # (B, D, S)

    # ---- stage 2: top-k attention, tiled over (batch, query tile) -----------
    fixed = 4 * S * D * asz + 2 * (D * D * wsz + D * 4)    # kt+v full-seq blocks + Wo/bo
    per_row = (2 * D * asz + 4 * D * 4 + 7 * S * 4
               + (2 * n_heads * S * 4 if return_attn else 0))
    budget_rows = max(8, int((0.6 * cap - fixed) // max(per_row, 1)))
    tq = _pick_q_tile(L, budget_rows)
    num_q = L // tq

    attn_est = int(fixed + tq * per_row + 2 * tq * D * 4)
    attn_vmem = int(min(cap, max(32 * 2**20, 2 * attn_est)))

    attn_cost = pl.CostEstimate(
        flops=2 * B * (2 * L * S * D + L * D * D),
        transcendentals=B * n_heads * L * S,
        bytes_accessed=int(B * L * D * (3 * asz + 2 * 4) + D * D * wsz
                           + (B * n_heads * L * S * 4 if return_attn else 0)))

    kernel = functools.partial(_attn_kernel, n_heads=n_heads, top_k=top_k,
                               with_attn=return_attn)

    if return_attn:
        out_shape = (jax.ShapeDtypeStruct((B, L, D), x.dtype),
                     jax.ShapeDtypeStruct((B, n_heads, L, S), jnp.float32))
        out_specs = (pl.BlockSpec((1, tq, D), lambda b, q: (b, q, 0)),
                     pl.BlockSpec((1, n_heads, tq, S), lambda b, q: (b, 0, q, 0)))
    else:
        out_shape = jax.ShapeDtypeStruct((B, L, D), x.dtype)
        out_specs = pl.BlockSpec((1, tq, D), lambda b, q: (b, q, 0))

    return pl.pallas_call(
        kernel,
        out_shape=out_shape,
        grid=(B, num_q),
        in_specs=[pl.BlockSpec((1, tq, D), lambda b, q: (b, q, 0)),     # q (relu'd)
                  pl.BlockSpec((1, D, S), lambda b, q: (b, 0, 0)),      # k^T (full seq)
                  pl.BlockSpec((1, S, D), lambda b, q: (b, 0, 0)),      # v (relu'd, full)
                  pl.BlockSpec((1, tq, D), lambda b, q: (b, q, 0)),     # residual x tile
                  pl.BlockSpec((D, D), lambda b, q: (0, 0)),            # Wo
                  pl.BlockSpec((1, D), lambda b, q: (0, 0))],           # bo
        out_specs=out_specs,
        scratch_shapes=[pltpu.VMEM((tq, S), jnp.float32),   # per-head scores
                        pltpu.VMEM((tq, 1), jnp.float32),   # top-k threshold per row
                        pltpu.VMEM((tq, 1), jnp.float32)],  # row max (softmax shift)
        # No state is carried across grid steps (projection hoisted), so both axes
        # are safe to mark "parallel" -> megacore split on v7x even when B == 1.
        compiler_params=pltpu.CompilerParams(
            dimension_semantics=("parallel", "parallel"),
            vmem_limit_bytes=attn_vmem),
        cost_estimate=attn_cost,
    )(q_act, kt_act, v_act, x, wo_c, bo_c)


def encoder_reference(x, params, *, n_heads, top_k):
    """Pure-JAX reference mirroring the PyTorch forward."""
    wq, bq, wk, bk, wv, bv, wo, bo = params
    B, L, D = x.shape
    E = D // n_heads
    q = jax.nn.relu(x @ wq + bq[0]).reshape(B, L, n_heads, E)
    k = (x @ wk + bk[0]).reshape(B, L, n_heads, E)
    v = jax.nn.relu(x @ wv + bv[0]).reshape(B, L, n_heads, E)
    scores = jnp.einsum('blhe,bshe->bhls', q, k)
    kth = -jnp.sort(-scores, axis=-1)[..., top_k - 1:top_k]
    masked = jnp.where(scores < kth, -jnp.inf, scores)
    A = jax.nn.softmax(masked / jnp.sqrt(float(E)), axis=-1)
    V = jnp.einsum('bhls,bshd->blhd', A, v).reshape(B, L, D)
    return x + V @ wo + bo[0], A


if __name__ == "__main__":
    B, L, D, H, TOP_K = 2, 8, 32, 4, 2   # small shapes consistent with Encoder(d_model, n_heads, top_k)

    key = jax.random.PRNGKey(0)
    keys = jax.random.split(key, 9)
    limit = 1.0 / sqrt(D)

    def lin(kw, kb):
        w = jax.random.uniform(kw, (D, D), jnp.float32, -limit, limit)
        b = jax.random.uniform(kb, (1, D), jnp.float32, -limit, limit)
        return w, b

    wq, bq = lin(keys[0], keys[1])
    wk, bk = lin(keys[2], keys[3])
    wv, bv = lin(keys[4], keys[5])
    wo, bo = lin(keys[6], keys[7])
    params = (wq, bq, wk, bk, wv, bv, wo, bo)

    x = jax.random.normal(keys[8], (B, L, D), jnp.float32)

    out, attn = encoder_forward(x, params, n_heads=H, top_k=TOP_K)
    out = jax.block_until_ready(out)
    attn = jax.block_until_ready(attn)

    ref_out, ref_attn = encoder_reference(x, params, n_heads=H, top_k=TOP_K)
    assert out.shape == (B, L, D) and attn.shape == (B, H, L, L)
    assert jnp.allclose(out, ref_out, atol=1e-5, rtol=1e-5)
    assert jnp.allclose(attn, ref_attn, atol=1e-5, rtol=1e-5)

    # Variant that skips the O(B*H*L*S) attention-matrix HBM write.
    out_only = jax.block_until_ready(
        encoder_forward(x, params, n_heads=H, top_k=TOP_K, return_attn=False))
    assert jnp.allclose(out_only, ref_out, atol=1e-5, rtol=1e-5)

    print("KERNEL_OK")
</pallas_src>

<mosaic_0001>
module attributes {stable_mosaic.version = 11 : i64} {
  func.func @_qkv_proj_kernel(%arg0: i32, %arg1: i32, %arg2: memref<1x8x32xf32, #tpu.memory_space<vmem>>, %arg3: memref<32x96xf32, #tpu.memory_space<vmem>>, %arg4: memref<1x96xf32, #tpu.memory_space<vmem>>, %arg5: memref<1x8x32xf32, #tpu.memory_space<vmem>>, %arg6: memref<1x8x32xf32, #tpu.memory_space<vmem>>, %arg7: memref<1x8x32xf32, #tpu.memory_space<vmem>>) attributes {dimension_semantics = [#tpu.dimension_semantics<parallel>, #tpu.dimension_semantics<parallel>], iteration_bounds = array<i64: 2, 1>, scalar_prefetch = 0 : i64, scratch_operands = 0 : i64, tpu.core_type = #tpu.core_type<tc>, window_params = [{transform_indices = @transform_0, window_bounds = array<i64: 1, 8, 32>}, {pipeline_mode = #tpu.pipeline_mode<synchronous>, transform_indices = @transform_1, window_bounds = array<i64: 32, 96>}, {pipeline_mode = #tpu.pipeline_mode<synchronous>, transform_indices = @transform_2, window_bounds = array<i64: 1, 96>}, {transform_indices = @transform_3, window_bounds = array<i64: 1, 8, 32>}, {transform_indices = @transform_4, window_bounds = array<i64: 1, 8, 32>}, {transform_indices = @transform_5, window_bounds = array<i64: 1, 8, 32>}]} {
    %c0 = arith.constant 0 : index
    %c0_0 = arith.constant 0 : index
    %0 = vector.load %arg3[%c0, %c0_0] : memref<32x96xf32, #tpu.memory_space<vmem>>, vector<32x96xf32>
    %c0_1 = arith.constant 0 : index
    %c0_2 = arith.constant 0 : index
    %c0_3 = arith.constant 0 : index
    %1 = vector.load %arg2[%c0_1, %c0_2, %c0_3] : memref<1x8x32xf32, #tpu.memory_space<vmem>>, vector<1x8x32xf32>
    %2 = vector.shape_cast %1 : vector<1x8x32xf32> to vector<8x32xf32>
    %cst = arith.constant dense<0.000000e+00> : vector<8x96xf32>
    %3 = tpu.matmul %2, %0, %cst {dimension_numbers = #tpu.dot_dimension_numbers<[1], [0], [0], [1], [0, 0, 1, 1], [], []>} : vector<8x32xf32>, vector<32x96xf32>, vector<8x96xf32> -> vector<8x96xf32>
    %c0_4 = arith.constant 0 : index
    %c0_5 = arith.constant 0 : index
    %4 = vector.load %arg4[%c0_4, %c0_5] : memref<1x96xf32, #tpu.memory_space<vmem>>, vector<1x96xf32>
    %5 = vector.shape_cast %4 : vector<1x96xf32> to vector<96xf32>
    %6 = vector.shape_cast %5 : vector<96xf32> to vector<1x96xf32>
    %7 = vector.broadcast %6 : vector<1x96xf32> to vector<8x96xf32>
    %8 = arith.addf %3, %7 : vector<8x96xf32>
    %9 = vector.extract_strided_slice %8 {offsets = [0, 0], sizes = [8, 32], strides = [1, 1]} : vector<8x96xf32> to vector<8x32xf32>
    %cst_6 = arith.constant 0.000000e+00 : f32
    %10 = vector.broadcast %cst_6 : f32 to vector<8x32xf32>
    %11 = arith.maximumf %9, %10 : vector<8x32xf32>
    %c0_7 = arith.constant 0 : index
    %c0_8 = arith.constant 0 : index
    %c0_9 = arith.constant 0 : index
    %12 = vector.load %arg5[%c0_7, %c0_8, %c0_9] : memref<1x8x32xf32, #tpu.memory_space<vmem>>, vector<1x8x32xf32>
    %13 = vector.shape_cast %12 : vector<1x8x32xf32> to vector<8x32xf32>
    %14 = vector.shape_cast %11 : vector<8x32xf32> to vector<1x8x32xf32>
    tpu.vector_store %arg5[%c0_7, %c0_8, %c0_9], %14 {strides = array<i32>} : memref<1x8x32xf32, #tpu.memory_space<vmem>>, vector<1x8x32xf32>,
    %15 = vector.extract_strided_slice %8 {offsets = [0, 32], sizes = [8, 32], strides = [1, 1]} : vector<8x96xf32> to vector<8x32xf32>
    %c0_10 = arith.constant 0 : index
    %c0_11 = arith.constant 0 : index
    %c0_12 = arith.constant 0 : index
    %16 = vector.load %arg6[%c0_10, %c0_11, %c0_12] : memref<1x8x32xf32, #tpu.memory_space<vmem>>, vector<1x8x32xf32>
    %17 = vector.shape_cast %16 : vector<1x8x32xf32> to vector<8x32xf32>
    %18 = vector.shape_cast %15 : vector<8x32xf32> to vector<1x8x32xf32>
    tpu.vector_store %arg6[%c0_10, %c0_11, %c0_12], %18 {strides = array<i32>} : memref<1x8x32xf32, #tpu.memory_space<vmem>>, vector<1x8x32xf32>,
    %19 = vector.extract_strided_slice %8 {offsets = [0, 64], sizes = [8, 32], strides = [1, 1]} : vector<8x96xf32> to vector<8x32xf32>
    %cst_13 = arith.constant 0.000000e+00 : f32
    %20 = vector.broadcast %cst_13 : f32 to vector<8x32xf32>
    %21 = arith.maximumf %19, %20 : vector<8x32xf32>
    %c0_14 = arith.constant 0 : index
    %c0_15 = arith.constant 0 : index
    %c0_16 = arith.constant 0 : index
    %22 = vector.load %arg7[%c0_14, %c0_15, %c0_16] : memref<1x8x32xf32, #tpu.memory_space<vmem>>, vector<1x8x32xf32>
    %23 = vector.shape_cast %22 : vector<1x8x32xf32> to vector<8x32xf32>
    %24 = vector.shape_cast %21 : vector<8x32xf32> to vector<1x8x32xf32>
    tpu.vector_store %arg7[%c0_14, %c0_15, %c0_16], %24 {strides = array<i32>} : memref<1x8x32xf32, #tpu.memory_space<vmem>>, vector<1x8x32xf32>,
    return
  }
  func.func @transform_0(%arg0: i32, %arg1: i32) -> (i32, i32, i32) {
    %c0_i32 = arith.constant 0 : i32
    %c0_i32_0 = arith.constant 0 : i32
    return %arg0, %arg1, %c0_i32 : i32, i32, i32
  }
  func.func @transform_1(%arg0: i32, %arg1: i32) -> (i32, i32) {
    %c0_i32 = arith.constant 0 : i32
    %c0_i32_0 = arith.constant 0 : i32
    %c0_i32_1 = arith.constant 0 : i32
    return %c0_i32, %c0_i32_0 : i32, i32
  }
  func.func @transform_2(%arg0: i32, %arg1: i32) -> (i32, i32) {
    %c0_i32 = arith.constant 0 : i32
    %c0_i32_0 = arith.constant 0 : i32
    %c0_i32_1 = arith.constant 0 : i32
    return %c0_i32, %c0_i32_0 : i32, i32
  }
  func.func @transform_3(%arg0: i32, %arg1: i32) -> (i32, i32, i32) {
    %c0_i32 = arith.constant 0 : i32
    %c0_i32_0 = arith.constant 0 : i32
    return %arg0, %arg1, %c0_i32 : i32, i32, i32
  }
  func.func @transform_4(%arg0: i32, %arg1: i32) -> (i32, i32, i32) {
    %c0_i32 = arith.constant 0 : i32
    %c0_i32_0 = arith.constant 0 : i32
    return %arg0, %arg1, %c0_i32 : i32, i32, i32
  }
  func.func @transform_5(%arg0: i32, %arg1: i32) -> (i32, i32, i32) {
    %c0_i32 = arith.constant 0 : i32
    %c0_i32_0 = arith.constant 0 : i32
    return %arg0, %arg1, %c0_i32 : i32, i32, i32
  }
}

</mosaic_0001>

<llo_original>
// kernel: tpu_custom_call.1
$region0: #{tpu_custom_call.1}
  #allocation0 [shape = 'u32[]', space=smem, size = 0x4, offset = 0x4, fixed_abs, tag = 'smem constant byte address 0x4 - core index']
  #allocation1 [shape = 'u32[144,128]{1,0:T(1,128)}', space=vmem, size = 0x12000, scoped, tag = 'internal scratch']
  %s0 = inlined_call_operand.hbm [shape: f32[2,8,32], index: 0, kind: input, shape index: {}]
  %s1 = inlined_call_operand.hbm [shape: f32[32,96], index: 1, kind: input, shape index: {}]
  %s2 = inlined_call_operand.vmem [shape: f32[1,96], index: 2, kind: input, shape index: {}]
  %s3 = inlined_call_operand.hbm [shape: f32[2,8,32], index: 3, kind: output, shape index: {0}]
  %s4 = inlined_call_operand.hbm [shape: f32[2,8,32], index: 4, kind: output, shape index: {1}]
  %s5 = inlined_call_operand.hbm [shape: f32[2,8,32], index: 5, kind: output, shape index: {2}]
  %6 = xla_tuple %s3, %s4, %s5
  %s7 = sld [smem:[#allocation0]]
  $region69: #{tpu_custom_call.1} parent=0
    _
  %s9 = ssub.s32 1, %s7
  %s10 = scalar_select 0, %s9, %s7
  $region1: #{tpu_custom_call.1} parent=0
    #allocation2 [shape = 'u8[8192]{0}', space=vmem, size = 0x2000, scoped, tag = 'input window, operand 0']
    #allocation3 [shape = 's32[2]{0}', space=sflag, size = 0x8, scoped, tag = 'scoped memory for tpu_custom_call.1']
    #allocation4 [shape = 's32[2]{0}', space=sflag, size = 0x8, scoped, tag = 'scoped memory for tpu_custom_call.1']
    #allocation5 [shape = 'u8[16384]{0}', space=vmem, size = 0x4000, scoped, tag = 'input window, operand 1, single buffered']
    #allocation6 [shape = 's32[1]{0}', space=sflag, size = 0x4, scoped, tag = 'scoped memory for tpu_custom_call.1']
    #allocation7 [shape = 'u8[8192]{0}', space=vmem, size = 0x2000, scoped, tag = 'output window, operand 0']
    #allocation8 [shape = 'u8[8192]{0}', space=vmem, size = 0x2000, scoped, tag = 'output window, operand 1']
    #allocation9 [shape = 's32[2]{0}', space=sflag, size = 0x8, scoped, tag = 'scoped memory for tpu_custom_call.1']
    #allocation10 [shape = 'u8[8192]{0}', space=vmem, size = 0x2000, scoped, tag = 'output window, operand 2']
    %11 = vsyncpa [#allocation3], 0
    %s12 = scalar_lea.sflag [#allocation3], 1
    %13 = vsyncpa %s12, 0
    %14 = vsyncpa [#allocation6], 0
    %15 = vsyncpa [#allocation4], 0
    %s16 = scalar_lea.sflag [#allocation4], 1
    %17 = vsyncpa %s16, 0
    %18 = vsyncpa [#allocation9], 0
    %s19 = scalar_lea.sflag [#allocation9], 1
    %20 = vsyncpa %s19, 0
    loop: start=0, step=1, limit=4
    $region2: #{tpu_custom_call.1} parent=1 // loop_pre_header
      _
    $region3: #{tpu_custom_call.1} parent=1 // loop_header
      %s22 = sphi 0, %s26
      %p23 = scmp.ge.s32.totalorder %s22, 4
      %s29 = sphi 0, %s41
      %s30 = sphi 0, %s37
      %s31 = sphi 0, %s29
      %s32 = sphi 0, %s30
      %s33 = sphi 0, %s31
      %s34 = sphi 0, %s32
      %s46 = sphi 0, %s48
      %s49 = sphi 0, %s46
      %s50 = sphi 0, %s49
      %s66 = sphi 0, %s50
      %s70 = sphi 0, %s70
      %s72 = sphi 0, %s70
      %s73 = sphi 0, %s72
      %s87 = sphi 0, %s73
      %s91 = sphi 0, %s91
      %s93 = sphi 0, %s91
      %s94 = sphi 0, %s93
      %s108 = sphi 0, %s94
      %s116 = sphi 0, %s118
      %s119 = sphi 0, %s116
      %s120 = sphi 0, %s119
      %s136 = sphi 0, %s120
      %s144 = sphi 0, %s146
      %s147 = sphi 0, %s144
      %s148 = sphi 0, %s147
      %s164 = sphi 0, %s148
      %s172 = sphi 0, %s174
      %s175 = sphi 0, %s172
      %s176 = sphi 0, %s175
      %s192 = sphi 0, %s176
    $region4: #{tpu_custom_call.1} parent=1 // loop_header_branch
      %25 = sbr.rel (%p23) target = $region8
    $region5: #{tpu_custom_call.1} parent=1 // loop_body
      %s27 = ssub.s32 %s22, 1
      %s28 = ssub.s32 %s22, 2
      %s35 = sadd.s32 1, %s30
      %p36 = scmp.ge.s32.totalorder %s35, 1
      %s37 = scalar_select %p36, 0, %s35
      %s38 = sadd.s32 1, %s29
      %s39 = scalar_select %p36, %s38, %s29
      %p40 = scmp.ge.s32.totalorder %s39, 2
      %s41 = scalar_select %p40, 0, %s39
      %s42 = ssub.s32 %s29, %s41
      %s43 = ssub.s32 %s30, %s37
      %s44 = sor.u32 %s42, %s43
      %p45 = scmp.eq.s32.totalorder %s44, 0
      %s47 = sadd.s32 %s46, 1
      %s48 = scalar_select %p45, %s46, %s47
      %p51 = pneg %p45
      %p52 = scmp.eq.s32.totalorder %s22, 1
      %p53 = por %p51, %p52
      %p54 = scmp.ne.s32.totalorder %s46, %s49
      %p55 = scmp.eq.s32.totalorder %s22, 0
      %p56 = por %p54, %p55
      %p57 = scmp.ne.s32.totalorder %s46, %s49
      %p58 = scmp.eq.s32.totalorder %s27, 1
      %p59 = por %p57, %p58
      %p60 = scmp.ne.s32.totalorder %s49, %s50
      %p61 = scmp.eq.s32.totalorder %s27, 0
      %p62 = por %p60, %p61
      %p63 = scmp.ne.s32.totalorder %s49, %s50
      %p64 = scmp.eq.s32.totalorder %s28, 1
      %p65 = por %p63, %p64
      %p67 = scmp.ne.s32.totalorder %s50, %s66
      %p68 = scmp.eq.s32.totalorder %s28, 0
      %p69 = por %p67, %p68
      %s71 = sadd.s32 %s70, 1
      %p74 = scmp.eq.s32.totalorder %s22, 1
      %p75 = scmp.ne.s32.totalorder %s70, %s72
      %p76 = scmp.eq.s32.totalorder %s22, 0
      %p77 = por %p75, %p76
      %p78 = scmp.ne.s32.totalorder %s70, %s72
      %p79 = scmp.eq.s32.totalorder %s27, 1
      %p80 = por %p78, %p79
      %p81 = scmp.ne.s32.totalorder %s72, %s73
      %p82 = scmp.eq.s32.totalorder %s27, 0
      %p83 = por %p81, %p82
      %p84 = scmp.ne.s32.totalorder %s72, %s73
      %p85 = scmp.eq.s32.totalorder %s28, 1
      %p86 = por %p84, %p85
      %p88 = scmp.ne.s32.totalorder %s73, %s87
      %p89 = scmp.eq.s32.totalorder %s28, 0
      %p90 = por %p88, %p89
      %s92 = sadd.s32 %s91, 1
      %p95 = scmp.eq.s32.totalorder %s22, 1
      %p96 = scmp.ne.s32.totalorder %s91, %s93
      %p97 = scmp.eq.s32.totalorder %s22, 0
      %p98 = por %p96, %p97
      %p99 = scmp.ne.s32.totalorder %s91, %s93
      %p100 = scmp.eq.s32.totalorder %s27, 1
      %p101 = por %p99, %p100
      %p102 = scmp.ne.s32.totalorder %s93, %s94
      %p103 = scmp.eq.s32.totalorder %s27, 0
      %p104 = por %p102, %p103
      %p105 = scmp.ne.s32.totalorder %s93, %s94
      %p106 = scmp.eq.s32.totalorder %s28, 1
      %p107 = por %p105, %p106
      %p109 = scmp.ne.s32.totalorder %s94, %s108
      %p110 = scmp.eq.s32.totalorder %s28, 0
      %p111 = por %p109, %p110
      %s112 = ssub.s32 %s29, %s41
      %s113 = ssub.s32 %s30, %s37
      %s114 = sor.u32 %s112, %s113
      %p115 = scmp.eq.s32.totalorder %s114, 0
      %s117 = sadd.s32 %s116, 1
      %s118 = scalar_select %p115, %s116, %s117
      %p121 = pneg %p115
      %p122 = scmp.eq.s32.totalorder %s22, 1
      %p123 = por %p121, %p122
      %p124 = scmp.ne.s32.totalorder %s116, %s119
      %p125 = scmp.eq.s32.totalorder %s22, 0
      %p126 = por %p124, %p125
      %p127 = scmp.ne.s32.totalorder %s116, %s119
      %p128 = scmp.eq.s32.totalorder %s27, 1
      %p129 = por %p127, %p128
      %p130 = scmp.ne.s32.totalorder %s119, %s120
      %p131 = scmp.eq.s32.totalorder %s27, 0
      %p132 = por %p130, %p131
      %p133 = scmp.ne.s32.totalorder %s119, %s120
      %p134 = scmp.eq.s32.totalorder %s28, 1
      %p135 = por %p133, %p134
      %p137 = scmp.ne.s32.totalorder %s120, %s136
      %p138 = scmp.eq.s32.totalorder %s28, 0
      %p139 = por %p137, %p138
      %s140 = ssub.s32 %s29, %s41
      %s141 = ssub.s32 %s30, %s37
      %s142 = sor.u32 %s140, %s141
      %p143 = scmp.eq.s32.totalorder %s142, 0
      %s145 = sadd.s32 %s144, 1
      %s146 = scalar_select %p143, %s144, %s145
      %p149 = pneg %p143
      %p150 = scmp.eq.s32.totalorder %s22, 1
      %p151 = por %p149, %p150
      %p152 = scmp.ne.s32.totalorder %s144, %s147
      %p153 = scmp.eq.s32.totalorder %s22, 0
      %p154 = por %p152, %p153
      %p155 = scmp.ne.s32.totalorder %s144, %s147
      %p156 = scmp.eq.s32.totalorder %s27, 1
      %p157 = por %p155, %p156
      %p158 = scmp.ne.s32.totalorder %s147, %s148
      %p159 = scmp.eq.s32.totalorder %s27, 0
      %p160 = por %p158, %p159
      %p161 = scmp.ne.s32.totalorder %s147, %s148
      %p162 = scmp.eq.s32.totalorder %s28, 1
      %p163 = por %p161, %p162
      %p165 = scmp.ne.s32.totalorder %s148, %s164
      %p166 = scmp.eq.s32.totalorder %s28, 0
      %p167 = por %p165, %p166
      %s168 = ssub.s32 %s29, %s41
      %s169 = ssub.s32 %s30, %s37
      %s170 = sor.u32 %s168, %s169
      %p171 = scmp.eq.s32.totalorder %s170, 0
      %s173 = sadd.s32 %s172, 1
      %s174 = scalar_select %p171, %s172, %s173
      %p177 = pneg %p171
      %p178 = scmp.eq.s32.totalorder %s22, 1
      %p179 = por %p177, %p178
      %p180 = scmp.ne.s32.totalorder %s172, %s175
      %p181 = scmp.eq.s32.totalorder %s22, 0
      %p182 = por %p180, %p181
      %p183 = scmp.ne.s32.totalorder %s172, %s175
      %p184 = scmp.eq.s32.totalorder %s27, 1
      %p185 = por %p183, %p184
      %p186 = scmp.ne.s32.totalorder %s175, %s176
      %p187 = scmp.eq.s32.totalorder %s27, 0
      %p188 = por %p186, %p187
      %p189 = scmp.ne.s32.totalorder %s175, %s176
      %p190 = scmp.eq.s32.totalorder %s28, 1
      %p191 = por %p189, %p190
      %p193 = scmp.ne.s32.totalorder %s176, %s192
      %p194 = scmp.eq.s32.totalorder %s28, 0
      %p195 = por %p193, %p194
      %p196 = scmp.le.s32.totalorder 1, %s22
      %p197 = scmp.lt.s32.totalorder %s22, 3
      %p198 = pnand %p196, %p197
      %p199 = pneg %p198
      // Predicated region
      $region9: #{tpu_custom_call.1} parent=5 // pred_check
        _
      $region10: #{tpu_custom_call.1} parent=5 // pred_check_branch
        %201 = sbr.rel (%p198) target = $region12
      $region11: #{tpu_custom_call.1} parent=5 // pred_region
        %s202 = ssub.s32 %s22, 1
        // Predicated region
        $region13: #{tpu_custom_call.1} parent=11 // pred_check
          %p203 = pneg %p83
        $region14: #{tpu_custom_call.1} parent=11 // pred_check_branch
          %205 = sbr.rel (%p203) target = $region16
        $region15: #{tpu_custom_call.1} parent=11 // pred_region
          %s207 = ssub.s32 512, 512
          %208 = vsyncadd [#allocation6], %s207
          %s209 = sshll.u32 [#allocation5], 4
          %s210 = int_to_ptr.vmem [resolvable:$true] %s209
          %215 = dma.hbm_to_vmem [thread:$0]  %s1, 512, %s210, [#allocation6], 128, 128, 8
        $region16: #{tpu_custom_call.1} parent=11 // pred_fallthru
          _
        // Predicated region
        $region17: #{tpu_custom_call.1} parent=11 // pred_check
          %p216 = pneg %p104
        $region18: #{tpu_custom_call.1} parent=11 // pred_check_branch
          %218 = sbr.rel (%p216) target = $region20
        $region19: #{tpu_custom_call.1} parent=11 // pred_region
          _
        $region20: #{tpu_custom_call.1} parent=11 // pred_fallthru
          _
      $region12: #{tpu_custom_call.1} parent=5 // pred_fallthru
        _
      %p219 = scmp.lt.s32.totalorder %s22, 2
      // Predicated region
      $region21: #{tpu_custom_call.1} parent=5 // pred_check
        %p220 = pneg %p219
      $region22: #{tpu_custom_call.1} parent=5 // pred_check_branch
        %222 = sbr.rel (%p220) target = $region24
      $region23: #{tpu_custom_call.1} parent=5 // pred_region
        // Predicated region
        $region25: #{tpu_custom_call.1} parent=23 // pred_check
          %p223 = pneg %p56
        $region26: #{tpu_custom_call.1} parent=23 // pred_check_branch
          %225 = sbr.rel (%p223) target = $region28
        $region27: #{tpu_custom_call.1} parent=23 // pred_region
          %s226 = sand.u32 %s46, 1
          %s227 = scalar_lea.sflag [#allocation3], %s226
          %s228 = sand.u32 %s46, 1
          %s229 = smul.addr %s228, 8
          %s230 = scalar_lea.vmem [#allocation2], %s229
          %s232 = ssub.s32 128, 128
          %233 = vsyncadd %s227, %s232
          %s234 = sadd.s32 %s30, %s29
          %s235 = smul.addr %s234, 128
          %s236 = scalar_lea.hbm %s0, %s235
          %s238 = sshll.u32 %s230, 4
          %s239 = int_to_ptr.vmem [resolvable:$true] %s238
          %241 = dma.hbm_to_vmem [thread:$0]  %s236, 128, %s239, %s227
        $region28: #{tpu_custom_call.1} parent=23 // pred_fallthru
          _
      $region24: #{tpu_custom_call.1} parent=5 // pred_fallthru
        _
      %p242 = scmp.le.s32.totalorder 1, %s22
      %p243 = scmp.lt.s32.totalorder %s22, 3
      %p244 = pnand %p242, %p243
      %p245 = pneg %p244
      // Predicated region
      $region29: #{tpu_custom_call.1} parent=5 // pred_check
        _
      $region30: #{tpu_custom_call.1} parent=5 // pred_check_branch
        %247 = sbr.rel (%p244) target = $region32
      $region31: #{tpu_custom_call.1} parent=5 // pred_region
        %s248 = ssub.s32 %s22, 1
        %s249 = sand.u32 %s49, 1
        %s250 = scalar_lea.sflag [#allocation3], %s249
        %s251 = sand.u32 %s49, 1
        %s252 = smul.addr %s251, 8
        %s253 = scalar_lea.vmem [#allocation2], %s252
        // Predicated region
        $region33: #{tpu_custom_call.1} parent=31 // pred_check
          %p254 = pneg %p62
        $region34: #{tpu_custom_call.1} parent=31 // pred_check_branch
          %256 = sbr.rel (%p254) target = $region36
        $region35: #{tpu_custom_call.1} parent=31 // pred_region
          %257 = dma.done %s250, 128
        $region36: #{tpu_custom_call.1} parent=31 // pred_fallthru
          _
        // Predicated region
        $region37: #{tpu_custom_call.1} parent=31 // pred_check
          %p258 = pneg %p83
        $region38: #{tpu_custom_call.1} parent=31 // pred_check_branch
          %260 = sbr.rel (%p258) target = $region40
        $region39: #{tpu_custom_call.1} parent=31 // pred_region
          %261 = dma.done [#allocation6], 512
        $region40: #{tpu_custom_call.1} parent=31 // pred_fallthru
          _
        %s262 = sand.u32 %s49, 1
        %s263 = scalar_lea.sflag [#allocation3], %s262
        %s264 = sand.u32 %s49, 1
        %s265 = smul.addr %s264, 8
        %s266 = scalar_lea.vmem [#allocation2], %s265
        %p267 = pneg %p62
        %p268 = pneg %p59
        %p269 = pneg %p83
        %p270 = pneg %p80
        %p271 = pneg %p104
        %p272 = pneg %p101
        %p273 = pneg %p132
        %p274 = pneg %p129
        %s275 = sand.u32 %s119, 1
        %s276 = scalar_lea.sflag [#allocation4], %s275
        %s277 = sand.u32 %s119, 1
        %s278 = smul.addr %s277, 8
        %s279 = scalar_lea.vmem [#allocation7], %s278
        %p280 = pneg %p160
        %p281 = pneg %p157
        %s282 = sand.u32 %s27, 1
        %s283 = scalar_lea.sflag [#allocation9], %s282
        %s284 = sand.u32 %s147, 1
        %s285 = smul.addr %s284, 8
        %s286 = scalar_lea.vmem [#allocation8], %s285
        %p287 = pneg %p188
        %p288 = pneg %p185
        %s289 = sand.u32 %s27, 1
        %s290 = scalar_lea.sflag [#allocation9], %s289
        %s291 = sand.u32 %s175, 1
        %s292 = smul.addr %s291, 8
        %s293 = scalar_lea.vmem [#allocation10], %s292
        %v294 = vld [vmem:[#allocation5] sm:$0xff]
        %v295 = vld [vmem:[#allocation5 + $0x8] sm:$0xff]
        %v296 = vld [vmem:[#allocation5 + $0x10] sm:$0xff]
        %v297 = vld [vmem:[#allocation5 + $0x18] sm:$0xff]
        %v298 = vld [vmem:[%s253] sm:$0xff]
        %v299 = vld [vmem:[%s2] sm:$0x1]
        %v301 = vlaneseq
        %v302 = vshrl.u32 %v301, 7
        %v303 = vsub.s32 0, %v302
        %v304 = vrot.slane %v299, %v303
        %vm306 = vcmask 261120
        %v308 = vsel %vm306, %v298, 0
        %310 = vmatprep.subr.mxu0 0.0
        %311 = vmatpush1.msra.mxu0 %v294
        %312 = vmatprep.subr.mxu0 0.0
        %313 = vmatpush1.msra.mxu0 %v295
        %314 = vmatprep.subr.mxu0 0.0
        %315 = vmatpush1.msra.mxu0 %v296
        %316 = vmatprep.subr.mxu0 0.0
        %317 = vmatpush1.msra.mxu0 %v297
        %318 = vmatprep.subr.mxu0 0.0
        %319 = vmatpush1.msra.mxu0 0.0
        %320 = vmatprep.subr.mxu0 0.0
        %321 = vmatpush1.msra.mxu0 0.0
        %322 = vmatprep.subr.mxu0 0.0
        %323 = vmatpush1.msra.mxu0 0.0
        %324 = vmatprep.subr.mxu0 0.0
        %325 = vmatpush1.msra.mxu0 0.0
        %326 = vmatprep.subr.mxu0 0.0
        %327 = vmatpush1.msra.mxu0 0.0
        %328 = vmatprep.subr.mxu0 0.0
        %329 = vmatpush1.msra.mxu0 0.0
        %330 = vmatprep.subr.mxu0 0.0
        %331 = vmatpush1.msra.mxu0 0.0
        %332 = vmatprep.subr.mxu0 0.0
        %333 = vmatpush1.msra.mxu0 0.0
        %334 = vmatprep.subr.mxu0 0.0
        %335 = vmatpush1.msra.mxu0 0.0
        %336 = vmatprep.subr.mxu0 0.0
        %337 = vmatpush1.msra.mxu0 0.0
        %338 = vmatprep.subr.mxu0 0.0
        %339 = vmatpush1.msra.mxu0 0.0
        %340 = vmatprep.subr.mxu0 0.0
        %341 = vmatpush1.msra.mxu0 0.0
        %342 = vmatprep.subr.mxu0 0.0
        %343 = vmatpush1.msra.mxu0 0.0
        %344 = vmatprep.subr.mxu0 0.0
        %345 = vmatpush1.msra.mxu0 0.0
        %346 = vmatprep.subr.mxu0 0.0
        %347 = vmatpush1.msra.mxu0 0.0
        %348 = vmatprep.subr.mxu0 0.0
        %349 = vmatpush1.msra.mxu0 0.0
        %350 = vmatprep.subr.mxu0 0.0
        %351 = vmatpush1.msra.mxu0 0.0
        %352 = vmatprep.subr.mxu0 0.0
        %353 = vmatpush1.msra.mxu0 0.0
        %354 = vmatprep.subr.mxu0 0.0
        %355 = vmatpush1.msra.mxu0 0.0
        %356 = vmatprep.subr.mxu0 0.0
        %357 = vmatpush1.msra.mxu0 0.0
        %358 = vmatprep.subr.mxu0 0.0
        %359 = vmatpush1.msra.mxu0 0.0
        %360 = vmatprep.subr.mxu0 0.0
        %361 = vmatpush1.msra.mxu0 0.0
        %362 = vmatprep.subr.mxu0 0.0
        %363 = vmatpush1.msra.mxu0 0.0
        %364 = vmatprep.subr.mxu0 0.0
        %365 = vmatpush1.msra.mxu0 0.0
        %366 = vmatprep.subr.mxu0 0.0
        %367 = vmatpush1.msra.mxu0 0.0
        %368 = vmatprep.subr.mxu0 0.0
        %369 = vmatpush1.msra.mxu0 0.0
        %370 = vmatprep.subr.mxu0 0.0
        %371 = vmatpush1.msra.mxu0 0.0
        %372 = vmatprep.subr.mxu0 0.0
        %373 = vmatpush1.msra.mxu0 0.0
        %374 = vmatprep.mubr.f32.mxu0 0.0
        %375 = vmatmul.mubr.f32.gmra.mrb[0].mxu0 %v308
        %v376 = vpop.f32.mrb[0].mxu0
        %v377 = vadd.f32 %v304, %v376
        %v378 = vpop.f32.mrb[0].mxu0
        %379 = vdwg.mxu0
        %v380 = vmax.f32 %v377, 0.0
        %381 = vst.msk [vmem:[%s279] sm:$0xff] %vm306, %v380
        %383 = vrot.lane.b32.xlu0 %v377, 96
        %v384 = vpop.permute.xlu0 %383
        %386 = vst.msk [vmem:[%s286] sm:$0xff] %vm306, %v384
        %388 = vrot.lane.b32.xlu0 %v380, 64
        %v389 = vpop.permute.xlu0 %388
        %391 = vst.msk [vmem:[%s293] sm:$0xff] %vm306, %v389
        %s392 = sand.u32 %s119, 1
        %s393 = scalar_lea.sflag [#allocation4], %s392
        %s394 = sand.u32 %s119, 1
        %s395 = smul.addr %s394, 8
        %s396 = scalar_lea.vmem [#allocation7], %s395
        %s397 = sand.u32 %s27, 1
        %s398 = scalar_lea.sflag [#allocation9], %s397
        %s399 = sand.u32 %s147, 1
        %s400 = smul.addr %s399, 8
        %s401 = scalar_lea.vmem [#allocation8], %s400
        %s402 = sand.u32 %s27, 1
        %s403 = scalar_lea.sflag [#allocation9], %s402
        %s404 = sand.u32 %s175, 1
        %s405 = smul.addr %s404, 8
        %s406 = scalar_lea.vmem [#allocation10], %s405
        // Predicated region
        $region41: #{tpu_custom_call.1} parent=31 // pred_check
          %p407 = pneg %p129
        $region42: #{tpu_custom_call.1} parent=31 // pred_check_branch
          %409 = sbr.rel (%p407) target = $region44
        $region43: #{tpu_custom_call.1} parent=31 // pred_region
          %s411 = ssub.s32 128, 128
          %412 = vsyncadd %s393, %s411
          %s413 = sadd.s32 %s32, %s31
          %s414 = smul.addr %s413, 128
          %s415 = scalar_lea.hbm %s3, %s414
          %s417 = sshll.u32 %s396, 4
          %s418 = int_to_ptr.vmem [resolvable:$true] %s417
          %420 = dma.vmem_to_hbm [thread:$0]  %s418, 128, %s415, %s393
        $region44: #{tpu_custom_call.1} parent=31 // pred_fallthru
          _
        // Predicated region
        $region45: #{tpu_custom_call.1} parent=31 // pred_check
          %p421 = pneg %p157
        $region46: #{tpu_custom_call.1} parent=31 // pred_check_branch
          %423 = sbr.rel (%p421) target = $region48
        $region47: #{tpu_custom_call.1} parent=31 // pred_region
          %s425 = ssub.s32 128, 128
          %426 = vsyncadd %s398, %s425
          %s427 = sadd.s32 %s32, %s31
          %s428 = smul.addr %s427, 128
          %s429 = scalar_lea.hbm %s4, %s428
          %s431 = sshll.u32 %s401, 4
          %s432 = int_to_ptr.vmem [resolvable:$true] %s431
          %434 = dma.vmem_to_hbm [thread:$0]  %s432, 128, %s429, %s398
        $region48: #{tpu_custom_call.1} parent=31 // pred_fallthru
          _
        // Predicated region
        $region49: #{tpu_custom_call.1} parent=31 // pred_check
          %p435 = pneg %p185
        $region50: #{tpu_custom_call.1} parent=31 // pred_check_branch
          %437 = sbr.rel (%p435) target = $region52
        $region51: #{tpu_custom_call.1} parent=31 // pred_region
          %s439 = ssub.s32 128, 128
          %440 = vsyncadd %s403, %s439
          %s441 = sadd.s32 %s32, %s31
          %s442 = smul.addr %s441, 128
          %s443 = scalar_lea.hbm %s5, %s442
          %s445 = sshll.u32 %s406, 4
          %s446 = int_to_ptr.vmem [resolvable:$true] %s445
          %448 = dma.vmem_to_hbm [thread:$0]  %s446, 128, %s443, %s403
        $region52: #{tpu_custom_call.1} parent=31 // pred_fallthru
          _
      $region32: #{tpu_custom_call.1} parent=5 // pred_fallthru
        _
      %p449 = scmp.le.s32.totalorder 2, %s22
      // Predicated region
      $region53: #{tpu_custom_call.1} parent=5 // pred_check
        %p450 = pneg %p449
      $region54: #{tpu_custom_call.1} parent=5 // pred_check_branch
        %452 = sbr.rel (%p450) target = $region56
      $region55: #{tpu_custom_call.1} parent=5 // pred_region
        %s453 = ssub.s32 %s22, 2
        // Predicated region
        $region57: #{tpu_custom_call.1} parent=55 // pred_check
          %p454 = pneg %p135
        $region58: #{tpu_custom_call.1} parent=55 // pred_check_branch
          %456 = sbr.rel (%p454) target = $region60
        $region59: #{tpu_custom_call.1} parent=55 // pred_region
          %s457 = sand.u32 %s120, 1
          %s458 = scalar_lea.sflag [#allocation4], %s457
          %s459 = sand.u32 %s120, 1
          %s460 = smul.addr %s459, 8
          %s461 = scalar_lea.vmem [#allocation7], %s460
          %462 = dma.done %s458, 128
        $region60: #{tpu_custom_call.1} parent=55 // pred_fallthru
          _
        // Predicated region
        $region61: #{tpu_custom_call.1} parent=55 // pred_check
          %p463 = pneg %p163
        $region62: #{tpu_custom_call.1} parent=55 // pred_check_branch
          %465 = sbr.rel (%p463) target = $region64
        $region63: #{tpu_custom_call.1} parent=55 // pred_region
          %s466 = sand.u32 %s28, 1
          %s467 = scalar_lea.sflag [#allocation9], %s466
          %s468 = sand.u32 %s148, 1
          %s469 = smul.addr %s468, 8
          %s470 = scalar_lea.vmem [#allocation8], %s469
          %471 = dma.done %s467, 128
        $region64: #{tpu_custom_call.1} parent=55 // pred_fallthru
          _
        // Predicated region
        $region65: #{tpu_custom_call.1} parent=55 // pred_check
          %p472 = pneg %p191
        $region66: #{tpu_custom_call.1} parent=55 // pred_check_branch
          %474 = sbr.rel (%p472) target = $region68
        $region67: #{tpu_custom_call.1} parent=55 // pred_region
          %s475 = sand.u32 %s28, 1
          %s476 = scalar_lea.sflag [#allocation9], %s475
          %s477 = sand.u32 %s176, 1
          %s478 = smul.addr %s477, 8
          %s479 = scalar_lea.vmem [#allocation10], %s478
          %480 = dma.done %s476, 128
        $region68: #{tpu_custom_call.1} parent=55 // pred_fallthru
          _
      $region56: #{tpu_custom_call.1} parent=5 // pred_fallthru
        _
    $region6: #{tpu_custom_call.1} parent=1 // loop_footer
      %s26 = sadd.s32 1, %s22
    $region7: #{tpu_custom_call.1} parent=1 // loop_footer_branch
      %21 = sbr.rel target = $region3
    $region8: #{tpu_custom_call.1} parent=1 // loop_exit
      _
    %481 = vsyncpa [#allocation3], 1
    %s482 = scalar_lea.sflag [#allocation3], 1
    %483 = vsyncpa %s482, 1
    %484 = vsyncpa [#allocation6], 1
    %485 = vsyncpa [#allocation4], 1
    %s486 = scalar_lea.sflag [#allocation4], 1
    %487 = vsyncpa %s486, 1
    %488 = vsyncpa [#allocation9], 1
    %s489 = scalar_lea.sflag [#allocation9], 1
    %490 = vsyncpa %s489, 1

</llo_original>
